<compile_context>
chip_gen: v6e
topology: v6e:2x2x1
jax: 0.10.0
libtpu: 0.0.40
codegen_flags: <defaults>
</compile_context>

<pallas_src>
import jax
import jax.numpy as jnp
from jax.experimental import pallas as pl
from jax.experimental.pallas import tpu as pltpu


def _shallow_classifier_kernel(rep_ref, probe_ref, w_s_ref, w_p_ref, b_ref,
                               logits_ref):
    # rep_ref:    (TNP, pack*S)          probe_ref:  (TNP, pack*P)
    # w_s_ref:    (pack*S, pack*L)       w_p_ref:    (pack*P, pack*L)
    # b_ref:      (1, pack*L) f32        logits_ref: (TNP, pack*L)
    acc = jnp.dot(rep_ref[...], w_s_ref[...],
                  preferred_element_type=jnp.float32)
    acc = acc + jnp.dot(probe_ref[...], w_p_ref[...],
                        preferred_element_type=jnp.float32)
    logits_ref[...] = (acc + b_ref[...]).astype(logits_ref.dtype)


def _block_diag(w, pack):
    """(D, L) -> (pack*D, pack*L) block-diagonal replication of w."""
    if pack == 1:
        return w
    d, l = w.shape
    eye = jnp.eye(pack, dtype=w.dtype)
    return (eye[:, None, :, None] * w[None, :, None, :]).reshape(pack * d,
                                                                  pack * l)


def _pick_pack(s, p):
    """Rows folded per packed row so the feature axis fills 128 lanes."""
    m = max(s, p, 1)
    if m >= 128:
        return 1
    return max(1, min(128 // m, 16))


def shallow_classifier_forward(representations, probes, weight, bias,
                               tile_n=8192):
    """representations: (N, S), probes: (N, P), weight: (S+P, L), bias: (L,)."""
    n, s = representations.shape
    n2, p = probes.shape
    assert n == n2, "batch mismatch between representations and probes"
    d, l = weight.shape
    assert d == s + p, "weight rows must equal S + P"

    out_dtype = jnp.result_type(representations.dtype, weight.dtype)

    # ---- lane-dense packing (free row-major reshapes) ----------------------
    pack = _pick_pack(s, p)
    n_pad = pl.cdiv(n, pack) * pack
    rep, prb = representations, probes
    if n_pad != n:
        rep = jnp.pad(rep, ((0, n_pad - n), (0, 0)))
        prb = jnp.pad(prb, ((0, n_pad - n), (0, 0)))
    n_pk = n_pad // pack
    rep_pk = rep.reshape(n_pk, pack * s)
    prb_pk = prb.reshape(n_pk, pack * p)

    # Split + block-diagonalize the linear weight so the packed matmuls compute
    # `pack` independent row-blocks at once; tile the bias to match.
    w_s_pk = _block_diag(weight[:s, :], pack)
    w_p_pk = _block_diag(weight[s:, :], pack)
    b_pk = jnp.tile(bias.astype(jnp.float32), pack).reshape(1, pack * l)

    # ---- batch tiling over packed rows -------------------------------------
    if n_pk <= 16:
        tnp = n_pk                                  # single full-extent block
    else:
        tnp = max(8, (min(max(tile_n // pack, 8), n_pk) // 8) * 8)
        # Ensure >= 2 grid steps so "parallel" shards across v7x TensorCores.
        half = ((pl.cdiv(n_pk, 2) + 7) // 8) * 8
        tnp = max(8, min(tnp, half))
    grid = (pl.cdiv(n_pk, tnp),)

    in_dt = representations.dtype.itemsize
    cost = pl.CostEstimate(
        flops=2 * n * (s + p) * l,
        transcendentals=0,
        bytes_accessed=(n_pad * (s + p) * in_dt
                        + n_pad * l * jnp.dtype(out_dtype).itemsize
                        + (w_s_pk.size + w_p_pk.size) * weight.dtype.itemsize
                        + b_pk.size * 4),
    )

    logits_pk = pl.pallas_call(
        _shallow_classifier_kernel,
        out_shape=jax.ShapeDtypeStruct((n_pk, pack * l), out_dtype),
        grid_spec=pl.GridSpec(
            grid=grid,
            in_specs=[
                pl.BlockSpec((tnp, pack * s), lambda i: (i, 0)),   # rep tile
                pl.BlockSpec((tnp, pack * p), lambda i: (i, 0)),   # probe tile
                pl.BlockSpec((pack * s, pack * l), lambda i: (0, 0)),  # W_s blkdiag
                pl.BlockSpec((pack * p, pack * l), lambda i: (0, 0)),  # W_p blkdiag
                pl.BlockSpec((1, pack * l), lambda i: (0, 0)),         # bias
            ],
            out_specs=pl.BlockSpec((tnp, pack * l), lambda i: (i, 0)),
        ),
        compiler_params=pltpu.CompilerParams(
            dimension_semantics=("parallel",)),     # megacore shards batch on v7x
        cost_estimate=cost,
    )(rep_pk, prb_pk, w_s_pk, w_p_pk, b_pk)

    # Free reshape back to (N, L); tiny L-wide argmax stays in XLA.
    logits = logits_pk.reshape(n_pad, l)[:n]
    predicted = jnp.argmax(logits, axis=1).astype(jnp.int32)
    return logits, predicted


if __name__ == "__main__":
    # Small shapes implied by the module:
    #   N = batch, S = dialogue_rep_dim, P = probe_dim, L = nlabels
    N, S, P, L = 256, 32, 16, 4
    D = S + P

    key = jax.random.PRNGKey(0)
    k_rep, k_probe, k_w, k_b = jax.random.split(key, 4)

    representations = jax.random.normal(k_rep, (N, S), dtype=jnp.float32)
    probes = jax.random.normal(k_probe, (N, P), dtype=jnp.float32)

    # Deterministic synthetic parameters for nn.Linear(D, L): weight (D, L), bias (L,)
    bound = 1.0 / (D ** 0.5)
    weight = jax.random.uniform(k_w, (D, L), jnp.float32, -bound, bound)
    bias = jax.random.uniform(k_b, (L,), jnp.float32, -bound, bound)

    logits, predicted = shallow_classifier_forward(
        representations, probes, weight, bias)
    jax.block_until_ready((logits, predicted))

    # Sanity check against a plain-JAX reference.
    x_ref = jnp.concatenate([representations, probes], axis=1)
    logits_ref = x_ref @ weight + bias
    pred_ref = jnp.argmax(jax.nn.log_softmax(logits_ref, axis=1), axis=1)
    assert logits.shape == (N, L) and predicted.shape == (N,)
    assert jnp.allclose(logits, logits_ref, atol=1e-5), "logits mismatch"
    assert jnp.array_equal(predicted, pred_ref.astype(jnp.int32)), "argmax mismatch"

    print("KERNEL_OK")
</pallas_src>

<mosaic_0001>
module attributes {stable_mosaic.version = 11 : i64} {
  func.func @_shallow_classifier_kernel(%arg0: i32, %arg1: memref<32x128xf32, #tpu.memory_space<vmem>>, %arg2: memref<32x64xf32, #tpu.memory_space<vmem>>, %arg3: memref<128x16xf32, #tpu.memory_space<vmem>>, %arg4: memref<64x16xf32, #tpu.memory_space<vmem>>, %arg5: memref<1x16xf32, #tpu.memory_space<vmem>>, %arg6: memref<32x16xf32, #tpu.memory_space<vmem>>) attributes {dimension_semantics = [#tpu.dimension_semantics<parallel>], iteration_bounds = array<i64: 2>, scalar_prefetch = 0 : i64, scratch_operands = 0 : i64, tpu.core_type = #tpu.core_type<tc>, window_params = [{transform_indices = @transform_0, window_bounds = array<i64: 32, 128>}, {transform_indices = @transform_1, window_bounds = array<i64: 32, 64>}, {pipeline_mode = #tpu.pipeline_mode<synchronous>, transform_indices = @transform_2, window_bounds = array<i64: 128, 16>}, {pipeline_mode = #tpu.pipeline_mode<synchronous>, transform_indices = @transform_3, window_bounds = array<i64: 64, 16>}, {pipeline_mode = #tpu.pipeline_mode<synchronous>, transform_indices = @transform_4, window_bounds = array<i64: 1, 16>}, {transform_indices = @transform_5, window_bounds = array<i64: 32, 16>}]} {
    %c0 = arith.constant 0 : index
    %c0_0 = arith.constant 0 : index
    %0 = vector.load %arg1[%c0, %c0_0] : memref<32x128xf32, #tpu.memory_space<vmem>>, vector<32x128xf32>
    %c0_1 = arith.constant 0 : index
    %c0_2 = arith.constant 0 : index
    %1 = vector.load %arg3[%c0_1, %c0_2] : memref<128x16xf32, #tpu.memory_space<vmem>>, vector<128x16xf32>
    %cst = arith.constant dense<0.000000e+00> : vector<32x16xf32>
    %2 = tpu.matmul %0, %1, %cst {dimension_numbers = #tpu.dot_dimension_numbers<[1], [0], [0], [1], [0, 0, 1, 1], [], []>} : vector<32x128xf32>, vector<128x16xf32>, vector<32x16xf32> -> vector<32x16xf32>
    %c0_3 = arith.constant 0 : index
    %c0_4 = arith.constant 0 : index
    %3 = vector.load %arg2[%c0_3, %c0_4] : memref<32x64xf32, #tpu.memory_space<vmem>>, vector<32x64xf32>
    %c0_5 = arith.constant 0 : index
    %c0_6 = arith.constant 0 : index
    %4 = vector.load %arg4[%c0_5, %c0_6] : memref<64x16xf32, #tpu.memory_space<vmem>>, vector<64x16xf32>
    %cst_7 = arith.constant dense<0.000000e+00> : vector<32x16xf32>
    %5 = tpu.matmul %3, %4, %cst_7 {dimension_numbers = #tpu.dot_dimension_numbers<[1], [0], [0], [1], [0, 0, 1, 1], [], []>} : vector<32x64xf32>, vector<64x16xf32>, vector<32x16xf32> -> vector<32x16xf32>
    %6 = arith.addf %2, %5 : vector<32x16xf32>
    %c0_8 = arith.constant 0 : index
    %c0_9 = arith.constant 0 : index
    %7 = vector.load %arg5[%c0_8, %c0_9] : memref<1x16xf32, #tpu.memory_space<vmem>>, vector<1x16xf32>
    %8 = vector.broadcast %7 : vector<1x16xf32> to vector<32x16xf32>
    %9 = arith.addf %6, %8 : vector<32x16xf32>
    %c0_10 = arith.constant 0 : index
    %c0_11 = arith.constant 0 : index
    %10 = vector.load %arg6[%c0_10, %c0_11] : memref<32x16xf32, #tpu.memory_space<vmem>>, vector<32x16xf32>
    tpu.vector_store %arg6[%c0_10, %c0_11], %9 {strides = array<i32>} : memref<32x16xf32, #tpu.memory_space<vmem>>, vector<32x16xf32>,
    return
  }
  func.func @transform_0(%arg0: i32) -> (i32, i32) {
    %c0_i32 = arith.constant 0 : i32
    %c0_i32_0 = arith.constant 0 : i32
    return %arg0, %c0_i32 : i32, i32
  }
  func.func @transform_1(%arg0: i32) -> (i32, i32) {
    %c0_i32 = arith.constant 0 : i32
    %c0_i32_0 = arith.constant 0 : i32
    return %arg0, %c0_i32 : i32, i32
  }
  func.func @transform_2(%arg0: i32) -> (i32, i32) {
    %c0_i32 = arith.constant 0 : i32
    %c0_i32_0 = arith.constant 0 : i32
    %c0_i32_1 = arith.constant 0 : i32
    return %c0_i32, %c0_i32_0 : i32, i32
  }
  func.func @transform_3(%arg0: i32) -> (i32, i32) {
    %c0_i32 = arith.constant 0 : i32
    %c0_i32_0 = arith.constant 0 : i32
    %c0_i32_1 = arith.constant 0 : i32
    return %c0_i32, %c0_i32_0 : i32, i32
  }
  func.func @transform_4(%arg0: i32) -> (i32, i32) {
    %c0_i32 = arith.constant 0 : i32
    %c0_i32_0 = arith.constant 0 : i32
    %c0_i32_1 = arith.constant 0 : i32
    return %c0_i32, %c0_i32_0 : i32, i32
  }
  func.func @transform_5(%arg0: i32) -> (i32, i32) {
    %c0_i32 = arith.constant 0 : i32
    %c0_i32_0 = arith.constant 0 : i32
    return %arg0, %c0_i32 : i32, i32
  }
}

</mosaic_0001>

<llo_original>
// kernel: tpu_custom_call.1
$region0: #{tpu_custom_call.1}
  #allocation0 [shape = 'u32[]', space=smem, size = 0x4, offset = 0x4, fixed_abs, tag = 'smem constant byte address 0x4 - core index']
  #allocation1 [shape = 'u32[144,128]{1,0:T(1,128)}', space=vmem, size = 0x12000, scoped, tag = 'internal scratch']
  %s0 = inlined_call_operand.vmem [shape: f32[64,128], index: 0, kind: input, shape index: {}]
  %s1 = inlined_call_operand.vmem [shape: f32[64,64], index: 1, kind: input, shape index: {}]
  %s2 = inlined_call_operand.vmem [shape: f32[128,16], index: 2, kind: input, shape index: {}]
  %s3 = inlined_call_operand.vmem [shape: f32[64,16], index: 3, kind: input, shape index: {}]
  %s4 = inlined_call_operand.vmem [shape: f32[1,16], index: 4, kind: input, shape index: {}]
  %s5 = inlined_call_operand.vmem [shape: f32[64,16], index: 5, kind: output, shape index: {}]
  %s6 = sld [smem:[#allocation0]]
  $region53: #{tpu_custom_call.1} parent=0
    _
  %s8 = ssub.s32 1, %s6
  %s9 = scalar_select 0, %s8, %s6
  loop: start=0, step=1, limit=4
  $region2: #{tpu_custom_call.1} parent=0 // loop_pre_header
    _
  $region3: #{tpu_custom_call.1} parent=0 // loop_header
    %s11 = sphi 0, %s15
    %p12 = scmp.ge.s32.totalorder %s11, 4
    %s21 = sphi 0, %s23
    %s24 = sphi 0, %s21
    %s25 = sphi 0, %s24
    %s41 = sphi 0, %s25
    %s47 = sphi 0, %s49
    %s50 = sphi 0, %s47
    %s51 = sphi 0, %s50
    %s67 = sphi 0, %s51
    %s71 = sphi 0, %s71
    %s73 = sphi 0, %s71
    %s74 = sphi 0, %s73
    %s88 = sphi 0, %s74
    %s92 = sphi 0, %s92
    %s94 = sphi 0, %s92
    %s95 = sphi 0, %s94
    %s109 = sphi 0, %s95
    %s113 = sphi 0, %s113
    %s115 = sphi 0, %s113
    %s116 = sphi 0, %s115
    %s130 = sphi 0, %s116
    %s136 = sphi 0, %s138
    %s139 = sphi 0, %s136
    %s140 = sphi 0, %s139
    %s156 = sphi 0, %s140
  $region4: #{tpu_custom_call.1} parent=0 // loop_header_branch
    %14 = sbr.rel (%p12) target = $region8
  $region5: #{tpu_custom_call.1} parent=0 // loop_body
    %s16 = ssub.s32 %s11, 1
    %s17 = ssub.s32 %s11, 2
    %s18 = sadd.s32 %s11, 1
    %s19 = ssub.s32 %s11, %s18
    %p20 = scmp.eq.s32.totalorder %s19, 0
    %s22 = sadd.s32 %s21, 1
    %s23 = scalar_select %p20, %s21, %s22
    %p26 = pneg %p20
    %p27 = scmp.eq.s32.totalorder %s11, 1
    %p28 = por %p26, %p27
    %p29 = scmp.ne.s32.totalorder %s21, %s24
    %p30 = scmp.eq.s32.totalorder %s11, 0
    %p31 = por %p29, %p30
    %p32 = scmp.ne.s32.totalorder %s21, %s24
    %p33 = scmp.eq.s32.totalorder %s16, 1
    %p34 = por %p32, %p33
    %p35 = scmp.ne.s32.totalorder %s24, %s25
    %p36 = scmp.eq.s32.totalorder %s16, 0
    %p37 = por %p35, %p36
    %p38 = scmp.ne.s32.totalorder %s24, %s25
    %p39 = scmp.eq.s32.totalorder %s17, 1
    %p40 = por %p38, %p39
    %p42 = scmp.ne.s32.totalorder %s25, %s41
    %p43 = scmp.eq.s32.totalorder %s17, 0
    %p44 = por %p42, %p43
    %s45 = ssub.s32 %s11, %s18
    %p46 = scmp.eq.s32.totalorder %s45, 0
    %s48 = sadd.s32 %s47, 1
    %s49 = scalar_select %p46, %s47, %s48
    %p52 = pneg %p46
    %p53 = scmp.eq.s32.totalorder %s11, 1
    %p54 = por %p52, %p53
    %p55 = scmp.ne.s32.totalorder %s47, %s50
    %p56 = scmp.eq.s32.totalorder %s11, 0
    %p57 = por %p55, %p56
    %p58 = scmp.ne.s32.totalorder %s47, %s50
    %p59 = scmp.eq.s32.totalorder %s16, 1
    %p60 = por %p58, %p59
    %p61 = scmp.ne.s32.totalorder %s50, %s51
    %p62 = scmp.eq.s32.totalorder %s16, 0
    %p63 = por %p61, %p62
    %p64 = scmp.ne.s32.totalorder %s50, %s51
    %p65 = scmp.eq.s32.totalorder %s17, 1
    %p66 = por %p64, %p65
    %p68 = scmp.ne.s32.totalorder %s51, %s67
    %p69 = scmp.eq.s32.totalorder %s17, 0
    %p70 = por %p68, %p69
    %s72 = sadd.s32 %s71, 1
    %p75 = scmp.eq.s32.totalorder %s11, 1
    %p76 = scmp.ne.s32.totalorder %s71, %s73
    %p77 = scmp.eq.s32.totalorder %s11, 0
    %p78 = por %p76, %p77
    %p79 = scmp.ne.s32.totalorder %s71, %s73
    %p80 = scmp.eq.s32.totalorder %s16, 1
    %p81 = por %p79, %p80
    %p82 = scmp.ne.s32.totalorder %s73, %s74
    %p83 = scmp.eq.s32.totalorder %s16, 0
    %p84 = por %p82, %p83
    %p85 = scmp.ne.s32.totalorder %s73, %s74
    %p86 = scmp.eq.s32.totalorder %s17, 1
    %p87 = por %p85, %p86
    %p89 = scmp.ne.s32.totalorder %s74, %s88
    %p90 = scmp.eq.s32.totalorder %s17, 0
    %p91 = por %p89, %p90
    %s93 = sadd.s32 %s92, 1
    %p96 = scmp.eq.s32.totalorder %s11, 1
    %p97 = scmp.ne.s32.totalorder %s92, %s94
    %p98 = scmp.eq.s32.totalorder %s11, 0
    %p99 = por %p97, %p98
    %p100 = scmp.ne.s32.totalorder %s92, %s94
    %p101 = scmp.eq.s32.totalorder %s16, 1
    %p102 = por %p100, %p101
    %p103 = scmp.ne.s32.totalorder %s94, %s95
    %p104 = scmp.eq.s32.totalorder %s16, 0
    %p105 = por %p103, %p104
    %p106 = scmp.ne.s32.totalorder %s94, %s95
    %p107 = scmp.eq.s32.totalorder %s17, 1
    %p108 = por %p106, %p107
    %p110 = scmp.ne.s32.totalorder %s95, %s109
    %p111 = scmp.eq.s32.totalorder %s17, 0
    %p112 = por %p110, %p111
    %s114 = sadd.s32 %s113, 1
    %p117 = scmp.eq.s32.totalorder %s11, 1
    %p118 = scmp.ne.s32.totalorder %s113, %s115
    %p119 = scmp.eq.s32.totalorder %s11, 0
    %p120 = por %p118, %p119
    %p121 = scmp.ne.s32.totalorder %s113, %s115
    %p122 = scmp.eq.s32.totalorder %s16, 1
    %p123 = por %p121, %p122
    %p124 = scmp.ne.s32.totalorder %s115, %s116
    %p125 = scmp.eq.s32.totalorder %s16, 0
    %p126 = por %p124, %p125
    %p127 = scmp.ne.s32.totalorder %s115, %s116
    %p128 = scmp.eq.s32.totalorder %s17, 1
    %p129 = por %p127, %p128
    %p131 = scmp.ne.s32.totalorder %s116, %s130
    %p132 = scmp.eq.s32.totalorder %s17, 0
    %p133 = por %p131, %p132
    %s134 = ssub.s32 %s11, %s18
    %p135 = scmp.eq.s32.totalorder %s134, 0
    %s137 = sadd.s32 %s136, 1
    %s138 = scalar_select %p135, %s136, %s137
    %p141 = pneg %p135
    %p142 = scmp.eq.s32.totalorder %s11, 1
    %p143 = por %p141, %p142
    %p144 = scmp.ne.s32.totalorder %s136, %s139
    %p145 = scmp.eq.s32.totalorder %s11, 0
    %p146 = por %p144, %p145
    %p147 = scmp.ne.s32.totalorder %s136, %s139
    %p148 = scmp.eq.s32.totalorder %s16, 1
    %p149 = por %p147, %p148
    %p150 = scmp.ne.s32.totalorder %s139, %s140
    %p151 = scmp.eq.s32.totalorder %s16, 0
    %p152 = por %p150, %p151
    %p153 = scmp.ne.s32.totalorder %s139, %s140
    %p154 = scmp.eq.s32.totalorder %s17, 1
    %p155 = por %p153, %p154
    %p157 = scmp.ne.s32.totalorder %s140, %s156
    %p158 = scmp.eq.s32.totalorder %s17, 0
    %p159 = por %p157, %p158
    %p160 = scmp.le.s32.totalorder 1, %s11
    %p161 = scmp.lt.s32.totalorder %s11, 3
    %p162 = pnand %p160, %p161
    %p163 = pneg %p162
    // Predicated region
    $region9: #{tpu_custom_call.1} parent=5 // pred_check
      _
    $region10: #{tpu_custom_call.1} parent=5 // pred_check_branch
      %165 = sbr.rel (%p162) target = $region12
    $region11: #{tpu_custom_call.1} parent=5 // pred_region
      %s166 = ssub.s32 %s11, 1
      // Predicated region
      $region13: #{tpu_custom_call.1} parent=11 // pred_check
        %p167 = pneg %p84
      $region14: #{tpu_custom_call.1} parent=11 // pred_check_branch
        %169 = sbr.rel (%p167) target = $region16
      $region15: #{tpu_custom_call.1} parent=11 // pred_region
        _
      $region16: #{tpu_custom_call.1} parent=11 // pred_fallthru
        _
      // Predicated region
      $region17: #{tpu_custom_call.1} parent=11 // pred_check
        %p170 = pneg %p105
      $region18: #{tpu_custom_call.1} parent=11 // pred_check_branch
        %172 = sbr.rel (%p170) target = $region20
      $region19: #{tpu_custom_call.1} parent=11 // pred_region
        _
      $region20: #{tpu_custom_call.1} parent=11 // pred_fallthru
        _
      // Predicated region
      $region21: #{tpu_custom_call.1} parent=11 // pred_check
        %p173 = pneg %p126
      $region22: #{tpu_custom_call.1} parent=11 // pred_check_branch
        %175 = sbr.rel (%p173) target = $region24
      $region23: #{tpu_custom_call.1} parent=11 // pred_region
        _
      $region24: #{tpu_custom_call.1} parent=11 // pred_fallthru
        _
    $region12: #{tpu_custom_call.1} parent=5 // pred_fallthru
      _
    %p176 = scmp.lt.s32.totalorder %s11, 2
    // Predicated region
    $region25: #{tpu_custom_call.1} parent=5 // pred_check
      %p177 = pneg %p176
    $region26: #{tpu_custom_call.1} parent=5 // pred_check_branch
      %179 = sbr.rel (%p177) target = $region28
    $region27: #{tpu_custom_call.1} parent=5 // pred_region
      // Predicated region
      $region29: #{tpu_custom_call.1} parent=27 // pred_check
        %p180 = pneg %p31
      $region30: #{tpu_custom_call.1} parent=27 // pred_check_branch
        %182 = sbr.rel (%p180) target = $region32
      $region31: #{tpu_custom_call.1} parent=27 // pred_region
        %s183 = smul.u32 4, %s11
        %p184 = scmp.lt.s32.totalorder %s183, 7
        %s185 = scalar_select %p184, %s183, 7
        %s186 = smul.addr %s185, 8
        %s187 = scalar_lea.vmem %s0, %s186
        %s188 = smul.u32 4, %s11
      $region32: #{tpu_custom_call.1} parent=27 // pred_fallthru
        _
      // Predicated region
      $region33: #{tpu_custom_call.1} parent=27 // pred_check
        %p189 = pneg %p57
      $region34: #{tpu_custom_call.1} parent=27 // pred_check_branch
        %191 = sbr.rel (%p189) target = $region36
      $region35: #{tpu_custom_call.1} parent=27 // pred_region
        %s192 = smul.u32 4, %s11
        %p193 = scmp.lt.s32.totalorder %s192, 7
        %s194 = scalar_select %p193, %s192, 7
        %s195 = smul.addr %s194, 8
        %s196 = scalar_lea.vmem %s1, %s195
        %s197 = smul.u32 4, %s11
      $region36: #{tpu_custom_call.1} parent=27 // pred_fallthru
        _
    $region28: #{tpu_custom_call.1} parent=5 // pred_fallthru
      _
    %p198 = scmp.le.s32.totalorder 1, %s11
    %p199 = scmp.lt.s32.totalorder %s11, 3
    %p200 = pnand %p198, %p199
    %p201 = pneg %p200
    // Predicated region
    $region37: #{tpu_custom_call.1} parent=5 // pred_check
      _
    $region38: #{tpu_custom_call.1} parent=5 // pred_check_branch
      %203 = sbr.rel (%p200) target = $region40
    $region39: #{tpu_custom_call.1} parent=5 // pred_region
      %s204 = ssub.s32 %s11, 1
      %s205 = smul.u32 4, %s16
      %p206 = scmp.lt.s32.totalorder %s205, 7
      %s207 = scalar_select %p206, %s205, 7
      %s208 = smul.addr %s207, 8
      %s209 = scalar_lea.vmem %s0, %s208
      %p210 = pneg %p37
      %p211 = pneg %p34
      %s212 = smul.u32 4, %s16
      %p213 = scmp.lt.s32.totalorder %s212, 7
      %s214 = scalar_select %p213, %s212, 7
      %s215 = smul.addr %s214, 8
      %s216 = scalar_lea.vmem %s1, %s215
      %p217 = pneg %p63
      %p218 = pneg %p60
      %p219 = pneg %p84
      %p220 = pneg %p81
      %p221 = pneg %p105
      %p222 = pneg %p102
      %p223 = pneg %p126
      %p224 = pneg %p123
      %p225 = pneg %p152
      %p226 = pneg %p149
      %s227 = smul.u32 4, %s16
      %p228 = scmp.lt.s32.totalorder %s227, 7
      %s229 = scalar_select %p228, %s227, 7
      %s230 = smul.addr %s229, 8
      %s231 = scalar_lea.vmem %s5, %s230
      %s232 = smul.u32 4, %s16
      %p233 = scmp.lt.s32.totalorder %s232, 7
      %s234 = scalar_select %p233, %s232, 7
      %s235 = smul.addr %s234, 8
      %s236 = scalar_lea.vmem %s0, %s235
      %s237 = smul.u32 4, %s16
      %s238 = smul.u32 4, %s16
      %p239 = scmp.lt.s32.totalorder %s238, 7
      %s240 = scalar_select %p239, %s238, 7
      %s241 = smul.addr %s240, 8
      %s242 = scalar_lea.vmem %s1, %s241
      %s243 = smul.u32 4, %s16
      %s244 = smul.u32 4, %s16
      %p245 = scmp.lt.s32.totalorder %s244, 7
      %s246 = scalar_select %p245, %s244, 7
      %s247 = smul.addr %s246, 8
      %s248 = scalar_lea.vmem %s5, %s247
      %s249 = smul.u32 4, %s16
      %v250 = vld [vmem:[%s236] sm:$0xff]
      %v251 = vld [vmem:[%s236 + $0x8] sm:$0xff]
      %v252 = vld [vmem:[%s236 + $0x10] sm:$0xff]
      %v253 = vld [vmem:[%s236 + $0x18] sm:$0xff]
      %v254 = vld [vmem:[%s2] sm:$0xff]
      %v255 = vld [vmem:[%s2 + $0x8] sm:$0xff]
      %v256 = vld [vmem:[%s2 + $0x10] sm:$0xff]
      %v257 = vld [vmem:[%s2 + $0x18] sm:$0xff]
      %v258 = vld [vmem:[%s2 + $0x20] sm:$0xff]
      %v259 = vld [vmem:[%s2 + $0x28] sm:$0xff]
      %v260 = vld [vmem:[%s2 + $0x30] sm:$0xff]
      %v261 = vld [vmem:[%s2 + $0x38] sm:$0xff]
      %v262 = vld [vmem:[%s2 + $0x40] sm:$0xff]
      %v263 = vld [vmem:[%s2 + $0x48] sm:$0xff]
      %v264 = vld [vmem:[%s2 + $0x50] sm:$0xff]
      %v265 = vld [vmem:[%s2 + $0x58] sm:$0xff]
      %v266 = vld [vmem:[%s2 + $0x60] sm:$0xff]
      %v267 = vld [vmem:[%s2 + $0x68] sm:$0xff]
      %v268 = vld [vmem:[%s2 + $0x70] sm:$0xff]
      %v269 = vld [vmem:[%s2 + $0x78] sm:$0xff]
      %v270 = vld [vmem:[%s242] sm:$0xff]
      %v271 = vld [vmem:[%s242 + $0x8] sm:$0xff]
      %v272 = vld [vmem:[%s242 + $0x10] sm:$0xff]
      %v273 = vld [vmem:[%s242 + $0x18] sm:$0xff]
      %v274 = vld [vmem:[%s3] sm:$0xff]
      %v275 = vld [vmem:[%s3 + $0x8] sm:$0xff]
      %v276 = vld [vmem:[%s3 + $0x10] sm:$0xff]
      %v277 = vld [vmem:[%s3 + $0x18] sm:$0xff]
      %v278 = vld [vmem:[%s3 + $0x20] sm:$0xff]
      %v279 = vld [vmem:[%s3 + $0x28] sm:$0xff]
      %v280 = vld [vmem:[%s3 + $0x30] sm:$0xff]
      %v281 = vld [vmem:[%s3 + $0x38] sm:$0xff]
      %vm282 = vcmask 523264
      %v284 = vsel %vm282, %v270, 0
      %v287 = vsel %vm282, %v271, 0
      %v290 = vsel %vm282, %v272, 0
      %v293 = vsel %vm282, %v273, 0
      %295 = vmatprep.subr.mxu0 0.0
      %296 = vmatpush1.msra.mxu0 0.0
      %297 = vmatprep.subr.mxu0 0.0
      %298 = vmatpush1.msra.mxu0 0.0
      %299 = vmatprep.subr.mxu0 0.0
      %300 = vmatpush1.msra.mxu0 0.0
      %301 = vmatprep.subr.mxu0 0.0
      %302 = vmatpush1.msra.mxu0 0.0
      %303 = vmatprep.subr.mxu0 0.0
      %304 = vmatpush1.msra.mxu0 0.0
      %305 = vmatprep.subr.mxu0 0.0
      %306 = vmatpush1.msra.mxu0 0.0
      %307 = vmatprep.subr.mxu0 0.0
      %308 = vmatpush1.msra.mxu0 0.0
      %309 = vmatprep.subr.mxu0 0.0
      %310 = vmatpush1.msra.mxu0 0.0
      %311 = vmatprep.subr.mxu0 0.0
      %312 = vmatpush1.msra.mxu0 %v281
      %313 = vmatprep.subr.mxu0 0.0
      %314 = vmatpush1.msra.mxu0 %v280
      %315 = vmatprep.subr.mxu0 0.0
      %316 = vmatpush1.msra.mxu0 %v279
      %317 = vmatprep.subr.mxu0 0.0
      %318 = vmatpush1.msra.mxu0 %v278
      %319 = vmatprep.subr.mxu0 0.0
      %320 = vmatpush1.msra.mxu0 %v277
      %321 = vmatprep.subr.mxu0 0.0
      %322 = vmatpush1.msra.mxu0 %v276
      %323 = vmatprep.subr.mxu0 0.0
      %324 = vmatpush1.msra.mxu0 %v275
      %325 = vmatprep.subr.mxu0 0.0
      %326 = vmatpush1.msra.mxu0 %v274
      %327 = vmatprep.subr.mxu0 0.0
      %328 = vmatpush2.msra.mxu0 0.0
      %329 = vmatprep.subr.mxu0 0.0
      %330 = vmatpush2.msra.mxu0 0.0
      %331 = vmatprep.subr.mxu0 0.0
      %332 = vmatpush2.msra.mxu0 0.0
      %333 = vmatprep.subr.mxu0 0.0
      %334 = vmatpush2.msra.mxu0 0.0
      %335 = vmatprep.subr.mxu0 0.0
      %336 = vmatpush2.msra.mxu0 0.0
      %337 = vmatprep.subr.mxu0 0.0
      %338 = vmatpush2.msra.mxu0 0.0
      %339 = vmatprep.subr.mxu0 0.0
      %340 = vmatpush2.msra.mxu0 0.0
      %341 = vmatprep.subr.mxu0 0.0
      %342 = vmatpush2.msra.mxu0 0.0
      %343 = vmatprep.subr.mxu0 0.0
      %344 = vmatpush2.msra.mxu0 0.0
      %345 = vmatprep.subr.mxu0 0.0
      %346 = vmatpush2.msra.mxu0 0.0
      %347 = vmatprep.subr.mxu0 0.0
      %348 = vmatpush2.msra.mxu0 0.0
      %349 = vmatprep.subr.mxu0 0.0
      %350 = vmatpush2.msra.mxu0 0.0
      %351 = vmatprep.subr.mxu0 0.0
      %352 = vmatpush2.msra.mxu0 0.0
      %353 = vmatprep.subr.mxu0 0.0
      %354 = vmatpush2.msra.mxu0 0.0
      %355 = vmatprep.subr.mxu0 0.0
      %356 = vmatpush2.msra.mxu0 0.0
      %357 = vmatprep.subr.mxu0 0.0
      %358 = vmatpush2.msra.mxu0 0.0
      %359 = vmatprep.mubr.f32.mxu0 0.0
      %360 = vmatmul.mubr.f32.gmra.mxu0 %v284
      %v361 = vpop.f32.mrf.mxu0
      %v362 = vadd.f32 0.0, %v361
      %v363 = vpop.f32.mrf.mxu0
      %364 = vmatprep.mubr.f32.mxu0 0.0
      %365 = vmatmul.mubr.f32.gmra.mxu0 %v287
      %v366 = vpop.f32.mrf.mxu0
      %v367 = vadd.f32 0.0, %v366
      %v368 = vpop.f32.mrf.mxu0
      %369 = vmatprep.mubr.f32.mxu0 0.0
      %370 = vmatmul.mubr.f32.gmra.mxu0 %v290
      %v371 = vpop.f32.mrf.mxu0
      %v372 = vadd.f32 0.0, %v371
      %v373 = vpop.f32.mrf.mxu0
      %374 = vmatprep.mubr.f32.mxu0 0.0
      %375 = vmatmul.mubr.f32.gmra.mxu0 %v293
      %v376 = vpop.f32.mrf.mxu0
      %v377 = vadd.f32 0.0, %v376
      %v378 = vpop.f32.mrf.mxu0
      %379 = vdwg.mxu0
      %380 = vmatprep.subr.mxu0 0.0
      %381 = vmatpush1.msra.mxu0 %v269
      %382 = vmatprep.subr.mxu0 0.0
      %383 = vmatpush1.msra.mxu0 %v268
      %384 = vmatprep.subr.mxu0 0.0
      %385 = vmatpush1.msra.mxu0 %v267
      %386 = vmatprep.subr.mxu0 0.0
      %387 = vmatpush1.msra.mxu0 %v266
      %388 = vmatprep.subr.mxu0 0.0
      %389 = vmatpush1.msra.mxu0 %v265
      %390 = vmatprep.subr.mxu0 0.0
      %391 = vmatpush1.msra.mxu0 %v264
      %392 = vmatprep.subr.mxu0 0.0
      %393 = vmatpush1.msra.mxu0 %v263
      %394 = vmatprep.subr.mxu0 0.0
      %395 = vmatpush1.msra.mxu0 %v262
      %396 = vmatprep.subr.mxu0 0.0
      %397 = vmatpush1.msra.mxu0 %v261
      %398 = vmatprep.subr.mxu0 0.0
      %399 = vmatpush1.msra.mxu0 %v260
      %400 = vmatprep.subr.mxu0 0.0
      %401 = vmatpush1.msra.mxu0 %v259
      %402 = vmatprep.subr.mxu0 0.0
      %403 = vmatpush1.msra.mxu0 %v258
      %404 = vmatprep.subr.mxu0 0.0
      %405 = vmatpush1.msra.mxu0 %v257
      %406 = vmatprep.subr.mxu0 0.0
      %407 = vmatpush1.msra.mxu0 %v256
      %408 = vmatprep.subr.mxu0 0.0
      %409 = vmatpush1.msra.mxu0 %v255
      %410 = vmatprep.subr.mxu0 0.0
      %411 = vmatpush1.msra.mxu0 %v254
      %412 = vmatprep.subr.mxu0 0.0
      %413 = vmatpush2.msra.mxu0 0.0
      %414 = vmatprep.subr.mxu0 0.0
      %415 = vmatpush2.msra.mxu0 0.0
      %416 = vmatprep.subr.mxu0 0.0
      %417 = vmatpush2.msra.mxu0 0.0
      %418 = vmatprep.subr.mxu0 0.0
      %419 = vmatpush2.msra.mxu0 0.0
      %420 = vmatprep.subr.mxu0 0.0
      %421 = vmatpush2.msra.mxu0 0.0
      %422 = vmatprep.subr.mxu0 0.0
      %423 = vmatpush2.msra.mxu0 0.0
      %424 = vmatprep.subr.mxu0 0.0
      %425 = vmatpush2.msra.mxu0 0.0
      %426 = vmatprep.subr.mxu0 0.0
      %427 = vmatpush2.msra.mxu0 0.0
      %428 = vmatprep.subr.mxu0 0.0
      %429 = vmatpush2.msra.mxu0 0.0
      %430 = vmatprep.subr.mxu0 0.0
      %431 = vmatpush2.msra.mxu0 0.0
      %432 = vmatprep.subr.mxu0 0.0
      %433 = vmatpush2.msra.mxu0 0.0
      %434 = vmatprep.subr.mxu0 0.0
      %435 = vmatpush2.msra.mxu0 0.0
      %436 = vmatprep.subr.mxu0 0.0
      %437 = vmatpush2.msra.mxu0 0.0
      %438 = vmatprep.subr.mxu0 0.0
      %439 = vmatpush2.msra.mxu0 0.0
      %440 = vmatprep.subr.mxu0 0.0
      %441 = vmatpush2.msra.mxu0 0.0
      %442 = vmatprep.subr.mxu0 0.0
      %443 = vmatpush2.msra.mxu0 0.0
      %444 = vmatprep.mubr.f32.mxu0 0.0
      %445 = vmatmul.mubr.f32.gmra.mxu0 %v250
      %v446 = vpop.f32.mrf.mxu0
      %v447 = vadd.f32 %v362, %v446
      %v448 = vpop.f32.mrf.mxu0
      %449 = vmatprep.mubr.f32.mxu0 0.0
      %450 = vmatmul.mubr.f32.gmra.mxu0 %v251
      %v451 = vpop.f32.mrf.mxu0
      %v452 = vadd.f32 %v367, %v451
      %v453 = vpop.f32.mrf.mxu0
      %454 = vmatprep.mubr.f32.mxu0 0.0
      %455 = vmatmul.mubr.f32.gmra.mxu0 %v252
      %v456 = vpop.f32.mrf.mxu0
      %v457 = vadd.f32 %v372, %v456
      %v458 = vpop.f32.mrf.mxu0
      %459 = vmatprep.mubr.f32.mxu0 0.0
      %460 = vmatmul.mubr.f32.gmra.mxu0 %v253
      %v461 = vpop.f32.mrf.mxu0
      %v462 = vadd.f32 %v377, %v461
      %v463 = vpop.f32.mrf.mxu0
      %464 = vdwg.mxu0
      %v465 = vld [vmem:[%s4] sm:$0x1]
      %v467 = vlaneseq
      %v468 = vshrl.u32 %v467, 7
      %v469 = vsub.s32 0, %v468
      %v470 = vrot.slane %v465, %v469
      %v472 = vadd.f32 %v447, %v470
      %v473 = vadd.f32 %v452, %v470
      %v474 = vadd.f32 %v457, %v470
      %v475 = vadd.f32 %v462, %v470
      %vm476 = vcmask 130048
      %477 = vst.msk [vmem:[%s248] sm:$0xff] %vm476, %v472
      %478 = vst.msk [vmem:[%s248 + $0x8] sm:$0xff] %vm476, %v473
      %479 = vst.msk [vmem:[%s248 + $0x10] sm:$0xff] %vm476, %v474
      %480 = vst.msk [vmem:[%s248 + $0x18] sm:$0xff] %vm476, %v475
      %s481 = smul.u32 4, %s16
      %p482 = scmp.lt.s32.totalorder %s481, 7
      %s483 = scalar_select %p482, %s481, 7
      %s484 = smul.addr %s483, 8
      %s485 = scalar_lea.vmem %s5, %s484
      // Predicated region
      $region41: #{tpu_custom_call.1} parent=39 // pred_check
        %p486 = pneg %p149
      $region42: #{tpu_custom_call.1} parent=39 // pred_check_branch
        %488 = sbr.rel (%p486) target = $region44
      $region43: #{tpu_custom_call.1} parent=39 // pred_region
        %s489 = smul.u32 4, %s16
      $region44: #{tpu_custom_call.1} parent=39 // pred_fallthru
        _
    $region40: #{tpu_custom_call.1} parent=5 // pred_fallthru
      _
    %p490 = scmp.le.s32.totalorder 2, %s11
    // Predicated region
    $region45: #{tpu_custom_call.1} parent=5 // pred_check
      %p491 = pneg %p490
    $region46: #{tpu_custom_call.1} parent=5 // pred_check_branch
      %493 = sbr.rel (%p491) target = $region48
    $region47: #{tpu_custom_call.1} parent=5 // pred_region
      %s494 = ssub.s32 %s11, 2
      // Predicated region
      $region49: #{tpu_custom_call.1} parent=47 // pred_check
        %p495 = pneg %p155
      $region50: #{tpu_custom_call.1} parent=47 // pred_check_branch
        %497 = sbr.rel (%p495) target = $region52
      $region51: #{tpu_custom_call.1} parent=47 // pred_region
        %s498 = smul.u32 4, %s17
        %p499 = scmp.lt.s32.totalorder %s498, 7
        %s500 = scalar_select %p499, %s498, 7
        %s501 = smul.addr %s500, 8
        %s502 = scalar_lea.vmem %s5, %s501
      $region52: #{tpu_custom_call.1} parent=47 // pred_fallthru
        _
    $region48: #{tpu_custom_call.1} parent=5 // pred_fallthru
      _
  $region6: #{tpu_custom_call.1} parent=0 // loop_footer
    %s15 = sadd.s32 1, %s11
  $region7: #{tpu_custom_call.1} parent=0 // loop_footer_branch
    %10 = sbr.rel target = $region3
  $region8: #{tpu_custom_call.1} parent=0 // loop_exit
    _

</llo_original>
